<compile_context>
chip_gen: v6e
topology: v6e:2x2x1
jax: 0.10.0
libtpu: 0.0.40
codegen_flags: <defaults>
</compile_context>

<pallas_src>
import jax
import jax.numpy as jnp
import numpy as np
from jax import lax
from jax.experimental import pallas as pl
from jax.experimental.pallas import tpu as pltpu


def mlp_kernel(x_ref, w1_ref, bw_ref, b2_ref, o_ref, acc_ref):
    # x_ref:   (TB, TK)      streamed batch x feature tile (bf16 or f32)
    # w1_ref:  (TK, H)       K-tile of w1^T (resident when KT == 1)
    # bw_ref:  (2, H)  f32   row 0 = b1, row 1 = second-layer weight
    # b2_ref:  (1,)    f32   SMEM scalar
    # o_ref:   (TB, 1)       output tile (revisited across K)
    # acc_ref: (TB, H) f32   VMEM scratch accumulator
    k = pl.program_id(1)

    @pl.when(k == 0)
    def _():
        acc_ref[...] = jnp.zeros_like(acc_ref)

    # Layer 1 partial sum on the MXU: canonical (M,K)x(K,N), f32 accumulation.
    acc_ref[...] += lax.dot_general(
        x_ref[...], w1_ref[...],
        dimension_numbers=(((1,), (0,)), ((), ())),
        preferred_element_type=jnp.float32,
    )

    @pl.when(k == pl.num_programs(1) - 1)
    def _():
        b1_row = bw_ref[0:1, :]                              # (1, H) f32
        w2_row = bw_ref[1:2, :]                              # (1, H) f32
        h = jnp.maximum(acc_ref[...] + b1_row, 0.0)          # bias + ReLU (VPU, f32)
        # Layer 2 (out_features = 1): VPU multiply + lane reduction, not an
        # N=1 MXU matmul.
        o = jnp.sum(h * w2_row, axis=-1, keepdims=True) + b2_ref[0]   # (TB, 1)
        o_ref[...] = o.astype(o_ref.dtype)


def _round_up(x, m):
    return ((x + m - 1) // m) * m


def mlp_forward(x, w1, b1, w2, b2, *, block_b_max=2048,
                compute_dtype=jnp.bfloat16, vmem_budget_bytes=40 * 2**20):
    """Pallas MLP forward.

    x: (B, F), w1: (H, F), b1: (H,), w2: (1, H), b2: (1,).
    Returns shape (B,) — matches PyTorch MLP.forward (squeeze(-1)).
    compute_dtype: dtype used for the streamed MXU inputs (bf16 by default;
    accumulation and bias/ReLU/reduce are always f32).
    """
    B, F = x.shape
    H = w1.shape[0]
    out_dtype = w1.dtype
    if compute_dtype is None:
        compute_dtype = w1.dtype

    # Match PyTorch: features = features.to(weight.dtype); then optional
    # bf16 cast for the memory-bound streaming path.
    x = x.astype(w1.dtype).astype(compute_dtype)
    # One-time wrapper transpose of the (small, resident) weight so the kernel
    # dot is the canonical layout — no per-tile XLU transpose of streamed x.
    w1t = jnp.transpose(w1).astype(compute_dtype)            # (F, H)

    # --- pad F (contraction) and H (lane) dims ---
    if F <= 512:
        F_pad = _round_up(F, 128)
        TK = F_pad
    else:
        TK = 512
        F_pad = _round_up(F, TK)
    H_pad = _round_up(H, 128)

    if F_pad != F:
        x = jnp.pad(x, ((0, 0), (0, F_pad - F)))
        w1t = jnp.pad(w1t, ((0, F_pad - F), (0, 0)))
    if H_pad != H:
        w1t = jnp.pad(w1t, ((0, 0), (0, H_pad - H)))

    # Fused resident (2, H) array: row 0 = b1, row 1 = layer-2 weight.
    # Padded H entries stay zero -> padded hidden units contribute nothing.
    bw = jnp.zeros((2, H_pad), jnp.float32)
    bw = bw.at[0, :H].set(b1.astype(jnp.float32))
    bw = bw.at[1, :H].set(w2.reshape(H).astype(jnp.float32))
    b2_s = b2.reshape(1).astype(jnp.float32)

    x_it = np.dtype(compute_dtype).itemsize
    w_it = x_it
    out_it = np.dtype(out_dtype).itemsize

    # --- batch tile from a VMEM budget (v7x-safe: 64 MiB/TC physical) ---
    # resident: double-buffered w1t K-tile + (2,H) bias/weight array
    resident = 2 * TK * H_pad * w_it + 2 * 8 * H_pad * 4
    # per unit of TB: x double-buffer + lane-padded output double-buffer + f32 acc
    per_tb = 2 * TK * x_it + 2 * 128 * 4 + H_pad * 4
    tb_budget = max(128, (((vmem_budget_bytes - resident) // per_tb) // 128) * 128)
    TB = int(min(tb_budget, block_b_max, _round_up(B, 128)))
    # v7x megacore: prefer >= 2 batch grid steps when B allows it, so the
    # "parallel" axis can actually shard across the 2 TensorCores.
    if B > 128 and TB >= _round_up(B, 128):
        TB = max(128, _round_up((B + 1) // 2, 128))

    B_pad = _round_up(B, TB)
    if B_pad != B:
        x = jnp.pad(x, ((0, B_pad - B), (0, 0)))
    G = B_pad // TB
    KT = F_pad // TK

    est_vmem = resident + TB * per_tb
    # Raise v5e's 16 MiB default scoped limit when needed; stay under v7x's
    # 64 MiB physical VMEM per TensorCore.
    vmem_limit = int(min(56 * 2**20, max(est_vmem + (4 << 20), 16 << 20)))

    cost = pl.CostEstimate(
        flops=2 * B_pad * F_pad * H_pad + 4 * B_pad * H_pad,
        transcendentals=0,
        bytes_accessed=(B_pad * F_pad * x_it            # streamed x
                        + G * F_pad * H_pad * w_it      # w1t re-read per batch tile when KT > 1
                        + 2 * H_pad * 4 + 4             # bw + b2
                        + B_pad * out_it),              # output
    )

    out = pl.pallas_call(
        mlp_kernel,
        out_shape=jax.ShapeDtypeStruct((B_pad, 1), out_dtype),
        grid_spec=pltpu.PrefetchScalarGridSpec(
            num_scalar_prefetch=0,
            grid=(G, KT),                                         # K (reduction) axis last
            in_specs=[
                pl.BlockSpec((TB, TK), lambda i, k: (i, k)),      # x: streamed tiles
                pl.BlockSpec((TK, H_pad), lambda i, k: (k, 0)),   # w1t: K-tiled
                pl.BlockSpec((2, H_pad), lambda i, k: (0, 0)),    # fused b1 / w2: resident
                pl.BlockSpec(memory_space=pltpu.MemorySpace.SMEM),  # b2 scalar in SMEM
            ],
            out_specs=pl.BlockSpec((TB, 1), lambda i, k: (i, 0)),
            scratch_shapes=[pltpu.VMEM((TB, H_pad), jnp.float32)],
        ),
        compiler_params=pltpu.CompilerParams(
            dimension_semantics=("parallel", "arbitrary"),
            vmem_limit_bytes=vmem_limit,
        ),
        cost_estimate=cost,
    )(x, w1t, bw, b2_s)

    return out[:B, 0]


def init_params(key, n_features, hidden_size, dtype=jnp.float32):
    """Deterministic PyTorch-style (Kaiming-uniform-ish) init for the two Linears."""
    k1, k2, k3, k4 = jax.random.split(key, 4)
    bound1 = 1.0 / np.sqrt(n_features)
    bound2 = 1.0 / np.sqrt(hidden_size)
    w1 = jax.random.uniform(k1, (hidden_size, n_features), dtype, -bound1, bound1)
    b1 = jax.random.uniform(k2, (hidden_size,), dtype, -bound1, bound1)
    w2 = jax.random.uniform(k3, (1, hidden_size), dtype, -bound2, bound2)
    b2 = jax.random.uniform(k4, (1,), dtype, -bound2, bound2)
    return w1, b1, w2, b2


def _ref_forward(x, w1, b1, w2, b2):
    # Pure-JAX reference (PyTorch convention: y = x @ W.T + b).
    return (jnp.maximum(x @ w1.T + b1, 0.0) @ w2.T + b2)[:, 0]


if __name__ == "__main__":
    key = jax.random.PRNGKey(0)

    # ---- spec-sized test: batch=8, n_features=16, hidden=32 ----
    batch, n_features, hidden_size = 8, 16, 32
    kx, kp, key = jax.random.split(key, 3)
    x = jax.random.normal(kx, (batch, n_features), dtype=jnp.float32)
    w1, b1, w2, b2 = init_params(kp, n_features, hidden_size)
    ref = _ref_forward(x, w1, b1, w2, b2)

    # f32 compute path: strict check of kernel structure / semantics.
    y_f32 = mlp_forward(x, w1, b1, w2, b2, compute_dtype=jnp.float32)
    jax.block_until_ready(y_f32)
    assert y_f32.shape == (batch,)
    np.testing.assert_allclose(np.asarray(y_f32), np.asarray(ref), rtol=1e-4, atol=1e-4)

    # bf16 streaming path (default): loose tolerance (f32 accumulation bounds error).
    y_bf16 = mlp_forward(x, w1, b1, w2, b2)
    jax.block_until_ready(y_bf16)
    assert y_bf16.shape == (batch,)
    np.testing.assert_allclose(np.asarray(y_bf16), np.asarray(ref), rtol=5e-2, atol=5e-2)

    # ---- second test exercising K-tiling (KT > 1) and G > 1 ----
    batch2, n_features2, hidden_size2 = 260, 600, 48
    kx2, kp2, key = jax.random.split(key, 3)
    x2 = jax.random.normal(kx2, (batch2, n_features2), dtype=jnp.float32)
    w1b, b1b, w2b, b2b = init_params(kp2, n_features2, hidden_size2)
    ref2 = _ref_forward(x2, w1b, b1b, w2b, b2b)

    y2 = mlp_forward(x2, w1b, b1b, w2b, b2b, compute_dtype=jnp.float32)
    jax.block_until_ready(y2)
    assert y2.shape == (batch2,)
    np.testing.assert_allclose(np.asarray(y2), np.asarray(ref2), rtol=1e-4, atol=1e-4)

    print("KERNEL_OK")
</pallas_src>

<mosaic_0001>
module attributes {stable_mosaic.version = 11 : i64} {
  func.func @mlp_kernel(%arg0: i32, %arg1: i32, %arg2: memref<128x128xf32, #tpu.memory_space<vmem>>, %arg3: memref<128x128xf32, #tpu.memory_space<vmem>>, %arg4: memref<2x128xf32, #tpu.memory_space<vmem>>, %arg5: memref<1xf32, #tpu.memory_space<smem>>, %arg6: memref<128x1xf32, #tpu.memory_space<vmem>>, %arg7: memref<128x128xf32, #tpu.memory_space<vmem>>) attributes {dimension_semantics = [#tpu.dimension_semantics<parallel>, #tpu.dimension_semantics<arbitrary>], iteration_bounds = array<i64: 1, 1>, scalar_prefetch = 0 : i64, scratch_operands = 1 : i64, tpu.core_type = #tpu.core_type<tc>, window_params = [{transform_indices = @transform_0, window_bounds = array<i64: 128, 128>}, {transform_indices = @transform_1, window_bounds = array<i64: 128, 128>}, {pipeline_mode = #tpu.pipeline_mode<synchronous>, transform_indices = @transform_2, window_bounds = array<i64: 2, 128>}, {transform_indices = @transform_3, window_bounds = array<i64: 1>}, {transform_indices = @transform_4, window_bounds = array<i64: 128, 1>}]} {
    %c0_i32 = arith.constant 0 : i32
    %0 = arith.cmpi eq, %arg1, %c0_i32 : i32
    %1 = arith.extui %0 : i1 to i32
    %c0_i32_0 = arith.constant 0 : i32
    %2 = arith.cmpi ne, %1, %c0_i32_0 : i32
    scf.if %2 {
      %cst_10 = arith.constant 0.000000e+00 : f32
      %12 = vector.broadcast %cst_10 : f32 to vector<128x128xf32>
      %c0_11 = arith.constant 0 : index
      %c0_12 = arith.constant 0 : index
      %13 = vector.load %arg7[%c0_11, %c0_12] : memref<128x128xf32, #tpu.memory_space<vmem>>, vector<128x128xf32>
      tpu.vector_store %arg7[%c0_11, %c0_12], %12 {strides = array<i32>} : memref<128x128xf32, #tpu.memory_space<vmem>>, vector<128x128xf32>,
    } else {
    }
    %c0 = arith.constant 0 : index
    %c0_1 = arith.constant 0 : index
    %3 = vector.load %arg7[%c0, %c0_1] : memref<128x128xf32, #tpu.memory_space<vmem>>, vector<128x128xf32>
    %c0_2 = arith.constant 0 : index
    %c0_3 = arith.constant 0 : index
    %4 = vector.load %arg2[%c0_2, %c0_3] : memref<128x128xf32, #tpu.memory_space<vmem>>, vector<128x128xf32>
    %c0_4 = arith.constant 0 : index
    %c0_5 = arith.constant 0 : index
    %5 = vector.load %arg3[%c0_4, %c0_5] : memref<128x128xf32, #tpu.memory_space<vmem>>, vector<128x128xf32>
    %cst = arith.constant dense<0.000000e+00> : vector<128x128xf32>
    %6 = tpu.matmul %4, %5, %cst {dimension_numbers = #tpu.dot_dimension_numbers<[1], [0], [0], [1], [0, 0, 1, 1], [], []>} : vector<128x128xf32>, vector<128x128xf32>, vector<128x128xf32> -> vector<128x128xf32>
    %7 = arith.addf %3, %6 : vector<128x128xf32>
    %c0_6 = arith.constant 0 : index
    %c0_7 = arith.constant 0 : index
    %8 = vector.load %arg7[%c0_6, %c0_7] : memref<128x128xf32, #tpu.memory_space<vmem>>, vector<128x128xf32>
    tpu.vector_store %arg7[%c0_6, %c0_7], %7 {strides = array<i32>} : memref<128x128xf32, #tpu.memory_space<vmem>>, vector<128x128xf32>,
    %c0_i32_8 = arith.constant 0 : i32
    %9 = arith.cmpi eq, %arg1, %c0_i32_8 : i32
    %10 = arith.extui %9 : i1 to i32
    %c0_i32_9 = arith.constant 0 : i32
    %11 = arith.cmpi ne, %10, %c0_i32_9 : i32
    scf.if %11 {
      %c0_10 = arith.constant 0 : index
      %c0_11 = arith.constant 0 : index
      %12 = vector.load %arg4[%c0_10, %c0_11] : memref<2x128xf32, #tpu.memory_space<vmem>>, vector<1x128xf32>
      %c1 = arith.constant 1 : index
      %c0_12 = arith.constant 0 : index
      %13 = vector.load %arg4[%c1, %c0_12] : memref<2x128xf32, #tpu.memory_space<vmem>>, vector<1x128xf32>
      %c0_13 = arith.constant 0 : index
      %c0_14 = arith.constant 0 : index
      %14 = vector.load %arg7[%c0_13, %c0_14] : memref<128x128xf32, #tpu.memory_space<vmem>>, vector<128x128xf32>
      %15 = vector.broadcast %12 : vector<1x128xf32> to vector<128x128xf32>
      %16 = arith.addf %14, %15 : vector<128x128xf32>
      %cst_15 = arith.constant 0.000000e+00 : f32
      %17 = vector.broadcast %cst_15 : f32 to vector<128x128xf32>
      %18 = arith.maximumf %16, %17 : vector<128x128xf32>
      %19 = vector.broadcast %13 : vector<1x128xf32> to vector<128x128xf32>
      %20 = arith.mulf %18, %19 : vector<128x128xf32>
      %cst_16 = arith.constant dense<0.000000e+00> : vector<128xf32>
      %21 = vector.multi_reduction <add>, %20, %cst_16 [1] : vector<128x128xf32> to vector<128xf32>
      %22 = vector.shape_cast %21 : vector<128xf32> to vector<128x1xf32>
      %c0_17 = arith.constant 0 : index
      %23 = memref.load %arg5[%c0_17] : memref<1xf32, #tpu.memory_space<smem>>
      %24 = vector.broadcast %23 : f32 to vector<128x1xf32>
      %25 = arith.addf %22, %24 : vector<128x1xf32>
      %c0_18 = arith.constant 0 : index
      %c0_19 = arith.constant 0 : index
      %26 = vector.load %arg6[%c0_18, %c0_19] : memref<128x1xf32, #tpu.memory_space<vmem>>, vector<128x1xf32>
      tpu.vector_store %arg6[%c0_18, %c0_19], %25 {strides = array<i32>} : memref<128x1xf32, #tpu.memory_space<vmem>>, vector<128x1xf32>,
    } else {
    }
    return
  }
  func.func @transform_0(%arg0: i32, %arg1: i32) -> (i32, i32) {
    %c0_i32 = arith.constant 0 : i32
    return %arg0, %arg1 : i32, i32
  }
  func.func @transform_1(%arg0: i32, %arg1: i32) -> (i32, i32) {
    %c0_i32 = arith.constant 0 : i32
    %c0_i32_0 = arith.constant 0 : i32
    return %arg1, %c0_i32 : i32, i32
  }
  func.func @transform_2(%arg0: i32, %arg1: i32) -> (i32, i32) {
    %c0_i32 = arith.constant 0 : i32
    %c0_i32_0 = arith.constant 0 : i32
    %c0_i32_1 = arith.constant 0 : i32
    return %c0_i32, %c0_i32_0 : i32, i32
  }
  func.func @transform_3(%arg0: i32, %arg1: i32) -> i32 {
    %c0_i32 = arith.constant 0 : i32
    %c0_i32_0 = arith.constant 0 : i32
    return %c0_i32 : i32
  }
  func.func @transform_4(%arg0: i32, %arg1: i32) -> (i32, i32) {
    %c0_i32 = arith.constant 0 : i32
    %c0_i32_0 = arith.constant 0 : i32
    return %arg0, %c0_i32 : i32, i32
  }
}

</mosaic_0001>

<llo_original>
// kernel: tpu_custom_call.1
$region0: #{tpu_custom_call.1}
  #allocation0 [shape = 'u32[]', space=smem, size = 0x4, offset = 0x4, fixed_abs, tag = 'smem constant byte address 0x4 - core index']
  #allocation1 [shape = 'u32[144,128]{1,0:T(1,128)}', space=vmem, size = 0x12000, scoped, tag = 'internal scratch']
  #allocation2 [shape = 'f32[128,128]{1,0:T(8,128)}', space=vmem, size = 0x10000, scoped, tag = 'scratch operand']
  #allocation3 [shape = 'f32[1]{0:T(128)S(6)}', space=smem, size = 0x200, scoped, tag = 'scoped memory for tpu_custom_call.1']
  %s0 = inlined_call_operand.hbm [shape: f32[128,128], index: 0, kind: input, shape index: {}]
  %s1 = inlined_call_operand.hbm [shape: f32[128,128], index: 1, kind: input, shape index: {}]
  %s2 = inlined_call_operand.vmem [shape: f32[2,128], index: 2, kind: input, shape index: {}]
  %s3 = inlined_call_operand.<no memory space> [shape: f32[1], index: 3, kind: input, shape index: {}]
  %s4 = inlined_call_operand.vmem [shape: f32[128,1], index: 4, kind: output, shape index: {}]
  %s5 = sld [smem:[#allocation0]]
  $region42: #{tpu_custom_call.1} parent=0
    _
  %s7 = ssub.s32 1, %s5
  %s8 = scalar_select 0, %s7, %s5
  %9 = sst [smem:[#allocation3]] %s3
  $region1: #{tpu_custom_call.1} parent=0
    #allocation4 [shape = 'u8[65536]{0}', space=vmem, size = 0x10000, scoped, tag = 'input window, operand 0, single buffered']
    #allocation5 [shape = 's32[1]{0}', space=sflag, size = 0x4, scoped, tag = 'scoped memory for tpu_custom_call.1']
    #allocation6 [shape = 'u8[65536]{0}', space=vmem, size = 0x10000, scoped, tag = 'input window, operand 1, single buffered']
    #allocation7 [shape = 's32[1]{0}', space=sflag, size = 0x4, scoped, tag = 'scoped memory for tpu_custom_call.1']
    %10 = vsyncpa [#allocation5], 0
    %11 = vsyncpa [#allocation7], 0
    // Predicated region
    $region2: #{tpu_custom_call.1} parent=1 // pred_check
      _
    $region3: #{tpu_custom_call.1} parent=1 // pred_check_branch
      %13 = sbr.rel (0) target = $region5
    $region4: #{tpu_custom_call.1} parent=1 // pred_region
      %s15 = ssub.s32 2048, 2048
      %16 = vsyncadd [#allocation5], %s15
      %s17 = sshll.u32 [#allocation4], 4
      %s18 = int_to_ptr.vmem [resolvable:$true] %s17
      %23 = dma.hbm_to_vmem [thread:$0]  %s0, 2048, %s18, [#allocation5], 128, 128, 8
    $region5: #{tpu_custom_call.1} parent=1 // pred_fallthru
      _
    // Predicated region
    $region6: #{tpu_custom_call.1} parent=1 // pred_check
      _
    $region7: #{tpu_custom_call.1} parent=1 // pred_check_branch
      %25 = sbr.rel (0) target = $region9
    $region8: #{tpu_custom_call.1} parent=1 // pred_region
      %s27 = ssub.s32 2048, 2048
      %28 = vsyncadd [#allocation7], %s27
      %s29 = sshll.u32 [#allocation6], 4
      %s30 = int_to_ptr.vmem [resolvable:$true] %s29
      %35 = dma.hbm_to_vmem [thread:$0]  %s1, 2048, %s30, [#allocation7], 128, 128, 8
    $region9: #{tpu_custom_call.1} parent=1 // pred_fallthru
      _
    // Predicated region
    $region10: #{tpu_custom_call.1} parent=1 // pred_check
      _
    $region11: #{tpu_custom_call.1} parent=1 // pred_check_branch
      %37 = sbr.rel (0) target = $region13
    $region12: #{tpu_custom_call.1} parent=1 // pred_region
      _
    $region13: #{tpu_custom_call.1} parent=1 // pred_fallthru
      _
    // Predicated region
    $region14: #{tpu_custom_call.1} parent=1 // pred_check
      _
    $region15: #{tpu_custom_call.1} parent=1 // pred_check_branch
      %39 = sbr.rel (0) target = $region17
    $region16: #{tpu_custom_call.1} parent=1 // pred_region
      _
    $region17: #{tpu_custom_call.1} parent=1 // pred_fallthru
      _
    // Predicated region
    $region18: #{tpu_custom_call.1} parent=1 // pred_check
      _
    $region19: #{tpu_custom_call.1} parent=1 // pred_check_branch
      %41 = sbr.rel (0) target = $region21
    $region20: #{tpu_custom_call.1} parent=1 // pred_region
      %42 = dma.done [#allocation5], 2048
    $region21: #{tpu_custom_call.1} parent=1 // pred_fallthru
      _
    // Predicated region
    $region22: #{tpu_custom_call.1} parent=1 // pred_check
      _
    $region23: #{tpu_custom_call.1} parent=1 // pred_check_branch
      %44 = sbr.rel (0) target = $region25
    $region24: #{tpu_custom_call.1} parent=1 // pred_region
      %45 = dma.done [#allocation7], 2048
    $region25: #{tpu_custom_call.1} parent=1 // pred_fallthru
      _
    %p46 = scmp.eq.s32.totalorder 0, 0
    // Predicated region
    $region26: #{tpu_custom_call.1} parent=1 // pred_check
      %p47 = pneg %p46
    $region27: #{tpu_custom_call.1} parent=1 // pred_check_branch
      %49 = sbr.rel (%p47) target = $region29
    $region28: #{tpu_custom_call.1} parent=1 // pred_region
      %50 = vst [vmem:[#allocation2] sm:$0xff] 0.0
      %51 = vst [vmem:[#allocation2 + $0x8] sm:$0xff] 0.0
      %52 = vst [vmem:[#allocation2 + $0x10] sm:$0xff] 0.0
      %53 = vst [vmem:[#allocation2 + $0x18] sm:$0xff] 0.0
      %54 = vst [vmem:[#allocation2 + $0x20] sm:$0xff] 0.0
      %55 = vst [vmem:[#allocation2 + $0x28] sm:$0xff] 0.0
      %56 = vst [vmem:[#allocation2 + $0x30] sm:$0xff] 0.0
      %57 = vst [vmem:[#allocation2 + $0x38] sm:$0xff] 0.0
      %58 = vst [vmem:[#allocation2 + $0x40] sm:$0xff] 0.0
      %59 = vst [vmem:[#allocation2 + $0x48] sm:$0xff] 0.0
      %60 = vst [vmem:[#allocation2 + $0x50] sm:$0xff] 0.0
      %61 = vst [vmem:[#allocation2 + $0x58] sm:$0xff] 0.0
      %62 = vst [vmem:[#allocation2 + $0x60] sm:$0xff] 0.0
      %63 = vst [vmem:[#allocation2 + $0x68] sm:$0xff] 0.0
      %64 = vst [vmem:[#allocation2 + $0x70] sm:$0xff] 0.0
      %65 = vst [vmem:[#allocation2 + $0x78] sm:$0xff] 0.0
    $region29: #{tpu_custom_call.1} parent=1 // pred_fallthru
      _
    %v66 = vld [vmem:[#allocation2] sm:$0xff]
    %v67 = vld [vmem:[#allocation2 + $0x8] sm:$0xff]
    %v68 = vld [vmem:[#allocation2 + $0x10] sm:$0xff]
    %v69 = vld [vmem:[#allocation2 + $0x18] sm:$0xff]
    %v70 = vld [vmem:[#allocation2 + $0x20] sm:$0xff]
    %v71 = vld [vmem:[#allocation2 + $0x28] sm:$0xff]
    %v72 = vld [vmem:[#allocation2 + $0x30] sm:$0xff]
    %v73 = vld [vmem:[#allocation2 + $0x38] sm:$0xff]
    %v74 = vld [vmem:[#allocation2 + $0x40] sm:$0xff]
    %v75 = vld [vmem:[#allocation2 + $0x48] sm:$0xff]
    %v76 = vld [vmem:[#allocation2 + $0x50] sm:$0xff]
    %v77 = vld [vmem:[#allocation2 + $0x58] sm:$0xff]
    %v78 = vld [vmem:[#allocation2 + $0x60] sm:$0xff]
    %v79 = vld [vmem:[#allocation2 + $0x68] sm:$0xff]
    %v80 = vld [vmem:[#allocation2 + $0x70] sm:$0xff]
    %v81 = vld [vmem:[#allocation2 + $0x78] sm:$0xff]
    %v82 = vld [vmem:[#allocation4] sm:$0xff]
    %v83 = vld [vmem:[#allocation4 + $0x8] sm:$0xff]
    %v84 = vld [vmem:[#allocation4 + $0x10] sm:$0xff]
    %v85 = vld [vmem:[#allocation4 + $0x18] sm:$0xff]
    %v86 = vld [vmem:[#allocation4 + $0x20] sm:$0xff]
    %v87 = vld [vmem:[#allocation4 + $0x28] sm:$0xff]
    %v88 = vld [vmem:[#allocation4 + $0x30] sm:$0xff]
    %v89 = vld [vmem:[#allocation4 + $0x38] sm:$0xff]
    %v90 = vld [vmem:[#allocation4 + $0x40] sm:$0xff]
    %v91 = vld [vmem:[#allocation4 + $0x48] sm:$0xff]
    %v92 = vld [vmem:[#allocation4 + $0x50] sm:$0xff]
    %v93 = vld [vmem:[#allocation4 + $0x58] sm:$0xff]
    %v94 = vld [vmem:[#allocation4 + $0x60] sm:$0xff]
    %v95 = vld [vmem:[#allocation4 + $0x68] sm:$0xff]
    %v96 = vld [vmem:[#allocation4 + $0x70] sm:$0xff]
    %v97 = vld [vmem:[#allocation4 + $0x78] sm:$0xff]
    %v98 = vld [vmem:[#allocation6] sm:$0xff]
    %v99 = vld [vmem:[#allocation6 + $0x8] sm:$0xff]
    %v100 = vld [vmem:[#allocation6 + $0x10] sm:$0xff]
    %v101 = vld [vmem:[#allocation6 + $0x18] sm:$0xff]
    %v102 = vld [vmem:[#allocation6 + $0x20] sm:$0xff]
    %v103 = vld [vmem:[#allocation6 + $0x28] sm:$0xff]
    %v104 = vld [vmem:[#allocation6 + $0x30] sm:$0xff]
    %v105 = vld [vmem:[#allocation6 + $0x38] sm:$0xff]
    %v106 = vld [vmem:[#allocation6 + $0x40] sm:$0xff]
    %v107 = vld [vmem:[#allocation6 + $0x48] sm:$0xff]
    %v108 = vld [vmem:[#allocation6 + $0x50] sm:$0xff]
    %v109 = vld [vmem:[#allocation6 + $0x58] sm:$0xff]
    %v110 = vld [vmem:[#allocation6 + $0x60] sm:$0xff]
    %v111 = vld [vmem:[#allocation6 + $0x68] sm:$0xff]
    %v112 = vld [vmem:[#allocation6 + $0x70] sm:$0xff]
    %v113 = vld [vmem:[#allocation6 + $0x78] sm:$0xff]
    %114 = vmatprep.subr.mxu0 0.0
    %115 = vmatpush1.msra.mxu0 %v113
    %116 = vmatprep.subr.mxu0 0.0
    %117 = vmatpush1.msra.mxu0 %v112
    %118 = vmatprep.subr.mxu0 0.0
    %119 = vmatpush1.msra.mxu0 %v111
    %120 = vmatprep.subr.mxu0 0.0
    %121 = vmatpush1.msra.mxu0 %v110
    %122 = vmatprep.subr.mxu0 0.0
    %123 = vmatpush1.msra.mxu0 %v109
    %124 = vmatprep.subr.mxu0 0.0
    %125 = vmatpush1.msra.mxu0 %v108
    %126 = vmatprep.subr.mxu0 0.0
    %127 = vmatpush1.msra.mxu0 %v107
    %128 = vmatprep.subr.mxu0 0.0
    %129 = vmatpush1.msra.mxu0 %v106
    %130 = vmatprep.subr.mxu0 0.0
    %131 = vmatpush1.msra.mxu0 %v105
    %132 = vmatprep.subr.mxu0 0.0
    %133 = vmatpush1.msra.mxu0 %v104
    %134 = vmatprep.subr.mxu0 0.0
    %135 = vmatpush1.msra.mxu0 %v103
    %136 = vmatprep.subr.mxu0 0.0
    %137 = vmatpush1.msra.mxu0 %v102
    %138 = vmatprep.subr.mxu0 0.0
    %139 = vmatpush1.msra.mxu0 %v101
    %140 = vmatprep.subr.mxu0 0.0
    %141 = vmatpush1.msra.mxu0 %v100
    %142 = vmatprep.subr.mxu0 0.0
    %143 = vmatpush1.msra.mxu0 %v99
    %144 = vmatprep.subr.mxu0 0.0
    %145 = vmatpush1.msra.mxu0 %v98
    %146 = vmatprep.subr.mxu0 0.0
    %147 = vmatpush2.msra.mxu0 0.0
    %148 = vmatprep.subr.mxu0 0.0
    %149 = vmatpush2.msra.mxu0 0.0
    %150 = vmatprep.subr.mxu0 0.0
    %151 = vmatpush2.msra.mxu0 0.0
    %152 = vmatprep.subr.mxu0 0.0
    %153 = vmatpush2.msra.mxu0 0.0
    %154 = vmatprep.subr.mxu0 0.0
    %155 = vmatpush2.msra.mxu0 0.0
    %156 = vmatprep.subr.mxu0 0.0
    %157 = vmatpush2.msra.mxu0 0.0
    %158 = vmatprep.subr.mxu0 0.0
    %159 = vmatpush2.msra.mxu0 0.0
    %160 = vmatprep.subr.mxu0 0.0
    %161 = vmatpush2.msra.mxu0 0.0
    %162 = vmatprep.subr.mxu0 0.0
    %163 = vmatpush2.msra.mxu0 0.0
    %164 = vmatprep.subr.mxu0 0.0
    %165 = vmatpush2.msra.mxu0 0.0
    %166 = vmatprep.subr.mxu0 0.0
    %167 = vmatpush2.msra.mxu0 0.0
    %168 = vmatprep.subr.mxu0 0.0
    %169 = vmatpush2.msra.mxu0 0.0
    %170 = vmatprep.subr.mxu0 0.0
    %171 = vmatpush2.msra.mxu0 0.0
    %172 = vmatprep.subr.mxu0 0.0
    %173 = vmatpush2.msra.mxu0 0.0
    %174 = vmatprep.subr.mxu0 0.0
    %175 = vmatpush2.msra.mxu0 0.0
    %176 = vmatprep.subr.mxu0 0.0
    %177 = vmatpush2.msra.mxu0 0.0
    %178 = vmatprep.mubr.f32.mxu0 0.0
    %179 = vmatmul.mubr.f32.gmra.mxu0 %v82
    %v180 = vpop.f32.mrf.mxu0
    %v181 = vadd.f32 0.0, %v180
    %v182 = vpop.f32.mrf.mxu0
    %183 = vmatprep.mubr.f32.mxu0 0.0
    %184 = vmatmul.mubr.f32.gmra.mxu0 %v83
    %v185 = vpop.f32.mrf.mxu0
    %v186 = vadd.f32 0.0, %v185
    %v187 = vpop.f32.mrf.mxu0
    %188 = vmatprep.mubr.f32.mxu0 0.0
    %189 = vmatmul.mubr.f32.gmra.mxu0 %v84
    %v190 = vpop.f32.mrf.mxu0
    %v191 = vadd.f32 0.0, %v190
    %v192 = vpop.f32.mrf.mxu0
    %193 = vmatprep.mubr.f32.mxu0 0.0
    %194 = vmatmul.mubr.f32.gmra.mxu0 %v85
    %v195 = vpop.f32.mrf.mxu0
    %v196 = vadd.f32 0.0, %v195
    %v197 = vpop.f32.mrf.mxu0
    %198 = vmatprep.mubr.f32.mxu0 0.0
    %199 = vmatmul.mubr.f32.gmra.mxu0 %v86
    %v200 = vpop.f32.mrf.mxu0
    %v201 = vadd.f32 0.0, %v200
    %v202 = vpop.f32.mrf.mxu0
    %203 = vmatprep.mubr.f32.mxu0 0.0
    %204 = vmatmul.mubr.f32.gmra.mxu0 %v87
    %v205 = vpop.f32.mrf.mxu0
    %v206 = vadd.f32 0.0, %v205
    %v207 = vpop.f32.mrf.mxu0
    %208 = vmatprep.mubr.f32.mxu0 0.0
    %209 = vmatmul.mubr.f32.gmra.mxu0 %v88
    %v210 = vpop.f32.mrf.mxu0
    %v211 = vadd.f32 0.0, %v210
    %v212 = vpop.f32.mrf.mxu0
    %213 = vmatprep.mubr.f32.mxu0 0.0
    %214 = vmatmul.mubr.f32.gmra.mxu0 %v89
    %v215 = vpop.f32.mrf.mxu0
    %v216 = vadd.f32 0.0, %v215
    %v217 = vpop.f32.mrf.mxu0
    %218 = vmatprep.mubr.f32.mxu0 0.0
    %219 = vmatmul.mubr.f32.gmra.mxu0 %v90
    %v220 = vpop.f32.mrf.mxu0
    %v221 = vadd.f32 0.0, %v220
    %v222 = vpop.f32.mrf.mxu0
    %223 = vmatprep.mubr.f32.mxu0 0.0
    %224 = vmatmul.mubr.f32.gmra.mxu0 %v91
    %v225 = vpop.f32.mrf.mxu0
    %v226 = vadd.f32 0.0, %v225
    %v227 = vpop.f32.mrf.mxu0
    %228 = vmatprep.mubr.f32.mxu0 0.0
    %229 = vmatmul.mubr.f32.gmra.mxu0 %v92
    %v230 = vpop.f32.mrf.mxu0
    %v231 = vadd.f32 0.0, %v230
    %v232 = vpop.f32.mrf.mxu0
    %233 = vmatprep.mubr.f32.mxu0 0.0
    %234 = vmatmul.mubr.f32.gmra.mxu0 %v93
    %v235 = vpop.f32.mrf.mxu0
    %v236 = vadd.f32 0.0, %v235
    %v237 = vpop.f32.mrf.mxu0
    %238 = vmatprep.mubr.f32.mxu0 0.0
    %239 = vmatmul.mubr.f32.gmra.mxu0 %v94
    %v240 = vpop.f32.mrf.mxu0
    %v241 = vadd.f32 0.0, %v240
    %v242 = vpop.f32.mrf.mxu0
    %243 = vmatprep.mubr.f32.mxu0 0.0
    %244 = vmatmul.mubr.f32.gmra.mxu0 %v95
    %v245 = vpop.f32.mrf.mxu0
    %v246 = vadd.f32 0.0, %v245
    %v247 = vpop.f32.mrf.mxu0
    %248 = vmatprep.mubr.f32.mxu0 0.0
    %249 = vmatmul.mubr.f32.gmra.mxu0 %v96
    %v250 = vpop.f32.mrf.mxu0
    %v251 = vadd.f32 0.0, %v250
    %v252 = vpop.f32.mrf.mxu0
    %253 = vmatprep.mubr.f32.mxu0 0.0
    %254 = vmatmul.mubr.f32.gmra.mxu0 %v97
    %v255 = vpop.f32.mrf.mxu0
    %v256 = vadd.f32 0.0, %v255
    %v257 = vpop.f32.mrf.mxu0
    %258 = vdwg.mxu0
    %v259 = vadd.f32 %v66, %v181
    %v260 = vadd.f32 %v67, %v186
    %v261 = vadd.f32 %v68, %v191
    %v262 = vadd.f32 %v69, %v196
    %v263 = vadd.f32 %v70, %v201
    %v264 = vadd.f32 %v71, %v206
    %v265 = vadd.f32 %v72, %v211
    %v266 = vadd.f32 %v73, %v216
    %v267 = vadd.f32 %v74, %v221
    %v268 = vadd.f32 %v75, %v226
    %v269 = vadd.f32 %v76, %v231
    %v270 = vadd.f32 %v77, %v236
    %v271 = vadd.f32 %v78, %v241
    %v272 = vadd.f32 %v79, %v246
    %v273 = vadd.f32 %v80, %v251
    %v274 = vadd.f32 %v81, %v256
    %275 = vst [vmem:[#allocation2] sm:$0xff] %v259
    %276 = vst [vmem:[#allocation2 + $0x8] sm:$0xff] %v260
    %277 = vst [vmem:[#allocation2 + $0x10] sm:$0xff] %v261
    %278 = vst [vmem:[#allocation2 + $0x18] sm:$0xff] %v262
    %279 = vst [vmem:[#allocation2 + $0x20] sm:$0xff] %v263
    %280 = vst [vmem:[#allocation2 + $0x28] sm:$0xff] %v264
    %281 = vst [vmem:[#allocation2 + $0x30] sm:$0xff] %v265
    %282 = vst [vmem:[#allocation2 + $0x38] sm:$0xff] %v266
    %283 = vst [vmem:[#allocation2 + $0x40] sm:$0xff] %v267
    %284 = vst [vmem:[#allocation2 + $0x48] sm:$0xff] %v268
    %285 = vst [vmem:[#allocation2 + $0x50] sm:$0xff] %v269
    %286 = vst [vmem:[#allocation2 + $0x58] sm:$0xff] %v270
    %287 = vst [vmem:[#allocation2 + $0x60] sm:$0xff] %v271
    %288 = vst [vmem:[#allocation2 + $0x68] sm:$0xff] %v272
    %289 = vst [vmem:[#allocation2 + $0x70] sm:$0xff] %v273
    %290 = vst [vmem:[#allocation2 + $0x78] sm:$0xff] %v274
    // Predicated region
    $region30: #{tpu_custom_call.1} parent=1 // pred_check
      %p291 = pneg %p46
    $region31: #{tpu_custom_call.1} parent=1 // pred_check_branch
      %293 = sbr.rel (%p291) target = $region33
    $region32: #{tpu_custom_call.1} parent=1 // pred_region
      %v294 = vld [vmem:[%s2] sm:$0x1]
      %v295 = vld [vmem:[%s2 + $0x1] sm:$0x1]
      %v296 = vld [vmem:[#allocation2] sm:$0xff]
      %v297 = vld [vmem:[#allocation2 + $0x8] sm:$0xff]
      %v298 = vld [vmem:[#allocation2 + $0x10] sm:$0xff]
      %v299 = vld [vmem:[#allocation2 + $0x18] sm:$0xff]
      %v300 = vld [vmem:[#allocation2 + $0x20] sm:$0xff]
      %v301 = vld [vmem:[#allocation2 + $0x28] sm:$0xff]
      %v302 = vld [vmem:[#allocation2 + $0x30] sm:$0xff]
      %v303 = vld [vmem:[#allocation2 + $0x38] sm:$0xff]
      %v304 = vld [vmem:[#allocation2 + $0x40] sm:$0xff]
      %v305 = vld [vmem:[#allocation2 + $0x48] sm:$0xff]
      %v306 = vld [vmem:[#allocation2 + $0x50] sm:$0xff]
      %v307 = vld [vmem:[#allocation2 + $0x58] sm:$0xff]
      %v308 = vld [vmem:[#allocation2 + $0x60] sm:$0xff]
      %v309 = vld [vmem:[#allocation2 + $0x68] sm:$0xff]
      %v310 = vld [vmem:[#allocation2 + $0x70] sm:$0xff]
      %v311 = vld [vmem:[#allocation2 + $0x78] sm:$0xff]
      %v312 = vlaneseq
      %v313 = vshrl.u32 %v312, 7
      %v314 = vsub.s32 0, %v313
      %v315 = vrot.slane %v294, %v314
      %v316 = vadd.f32 %v296, %v315
      %v317 = vadd.f32 %v297, %v315
      %v318 = vadd.f32 %v298, %v315
      %v319 = vadd.f32 %v299, %v315
      %v320 = vadd.f32 %v300, %v315
      %v321 = vadd.f32 %v301, %v315
      %v322 = vadd.f32 %v302, %v315
      %v323 = vadd.f32 %v303, %v315
      %v324 = vadd.f32 %v304, %v315
      %v325 = vadd.f32 %v305, %v315
      %v326 = vadd.f32 %v306, %v315
      %v327 = vadd.f32 %v307, %v315
      %v328 = vadd.f32 %v308, %v315
      %v329 = vadd.f32 %v309, %v315
      %v330 = vadd.f32 %v310, %v315
      %v331 = vadd.f32 %v311, %v315
      %v332 = vmax.f32 %v316, 0.0
      %v333 = vmax.f32 %v317, 0.0
      %v334 = vmax.f32 %v318, 0.0
      %v335 = vmax.f32 %v319, 0.0
      %v336 = vmax.f32 %v320, 0.0
      %v337 = vmax.f32 %v321, 0.0
      %v338 = vmax.f32 %v322, 0.0
      %v339 = vmax.f32 %v323, 0.0
      %v340 = vmax.f32 %v324, 0.0
      %v341 = vmax.f32 %v325, 0.0
      %v342 = vmax.f32 %v326, 0.0
      %v343 = vmax.f32 %v327, 0.0
      %v344 = vmax.f32 %v328, 0.0
      %v345 = vmax.f32 %v329, 0.0
      %v346 = vmax.f32 %v330, 0.0
      %v347 = vmax.f32 %v331, 0.0
      %v348 = vlaneseq
      %v349 = vshrl.u32 %v348, 7
      %v350 = vsub.s32 0, %v349
      %v351 = vrot.slane %v295, %v350
      %v352 = vmul.f32 %v332, %v351
      %v353 = vmul.f32 %v333, %v351
      %v354 = vmul.f32 %v334, %v351
      %v355 = vmul.f32 %v335, %v351
      %v356 = vmul.f32 %v336, %v351
      %v357 = vmul.f32 %v337, %v351
      %v358 = vmul.f32 %v338, %v351
      %v359 = vmul.f32 %v339, %v351
      %v360 = vmul.f32 %v340, %v351
      %v361 = vmul.f32 %v341, %v351
      %v362 = vmul.f32 %v342, %v351
      %v363 = vmul.f32 %v343, %v351
      %v364 = vmul.f32 %v344, %v351
      %v365 = vmul.f32 %v345, %v351
      %v366 = vmul.f32 %v346, %v351
      %v367 = vmul.f32 %v347, %v351
      %368 = vadd.xlane.f32.xlu0 %v352
      %v369 = vpop.xlane.xlu0 %368
      %370 = vadd.xlane.f32.xlu0 %v353
      %v371 = vpop.xlane.xlu0 %370
      %372 = vadd.xlane.f32.xlu0 %v354
      %v373 = vpop.xlane.xlu0 %372
      %374 = vadd.xlane.f32.xlu0 %v355
      %v375 = vpop.xlane.xlu0 %374
      %376 = vadd.xlane.f32.xlu0 %v356
      %v377 = vpop.xlane.xlu0 %376
      %378 = vadd.xlane.f32.xlu0 %v357
      %v379 = vpop.xlane.xlu0 %378
      %380 = vadd.xlane.f32.xlu0 %v358
      %v381 = vpop.xlane.xlu0 %380
      %382 = vadd.xlane.f32.xlu0 %v359
      %v383 = vpop.xlane.xlu0 %382
      %384 = vadd.xlane.f32.xlu0 %v360
      %v385 = vpop.xlane.xlu0 %384
      %386 = vadd.xlane.f32.xlu0 %v361
      %v387 = vpop.xlane.xlu0 %386
      %388 = vadd.xlane.f32.xlu0 %v362
      %v389 = vpop.xlane.xlu0 %388
      %390 = vadd.xlane.f32.xlu0 %v363
      %v391 = vpop.xlane.xlu0 %390
      %392 = vadd.xlane.f32.xlu0 %v364
      %v393 = vpop.xlane.xlu0 %392
      %394 = vadd.xlane.f32.xlu0 %v365
      %v395 = vpop.xlane.xlu0 %394
      %396 = vadd.xlane.f32.xlu0 %v366
      %v397 = vpop.xlane.xlu0 %396
      %398 = vadd.xlane.f32.xlu0 %v367
      %v399 = vpop.xlane.xlu0 %398
      %s400 = sld [smem:[#allocation3]]
      %v401 = vstv %s400
      %v402 = vadd.f32 %v369, %v401
      %v403 = vadd.f32 %v371, %v401
      %v404 = vadd.f32 %v373, %v401
      %v405 = vadd.f32 %v375, %v401
      %v406 = vadd.f32 %v377, %v401
      %v407 = vadd.f32 %v379, %v401
      %v408 = vadd.f32 %v381, %v401
      %v409 = vadd.f32 %v383, %v401
      %v410 = vadd.f32 %v385, %v401
      %v411 = vadd.f32 %v387, %v401
      %v412 = vadd.f32 %v389, %v401
      %v413 = vadd.f32 %v391, %v401
      %v414 = vadd.f32 %v393, %v401
      %v415 = vadd.f32 %v395, %v401
      %v416 = vadd.f32 %v397, %v401
      %v417 = vadd.f32 %v399, %v401
      %vm418 = vcmask 7168
      %419 = vst.msk [vmem:[%s4] sm:$0xff] %vm418, %v402
      %420 = vst.msk [vmem:[%s4 + $0x8] sm:$0xff] %vm418, %v403
      %421 = vst.msk [vmem:[%s4 + $0x10] sm:$0xff] %vm418, %v404
      %422 = vst.msk [vmem:[%s4 + $0x18] sm:$0xff] %vm418, %v405
      %423 = vst.msk [vmem:[%s4 + $0x20] sm:$0xff] %vm418, %v406
      %424 = vst.msk [vmem:[%s4 + $0x28] sm:$0xff] %vm418, %v407
      %425 = vst.msk [vmem:[%s4 + $0x30] sm:$0xff] %vm418, %v408
      %426 = vst.msk [vmem:[%s4 + $0x38] sm:$0xff] %vm418, %v409
      %427 = vst.msk [vmem:[%s4 + $0x40] sm:$0xff] %vm418, %v410
      %428 = vst.msk [vmem:[%s4 + $0x48] sm:$0xff] %vm418, %v411
      %429 = vst.msk [vmem:[%s4 + $0x50] sm:$0xff] %vm418, %v412
      %430 = vst.msk [vmem:[%s4 + $0x58] sm:$0xff] %vm418, %v413
      %431 = vst.msk [vmem:[%s4 + $0x60] sm:$0xff] %vm418, %v414
      %432 = vst.msk [vmem:[%s4 + $0x68] sm:$0xff] %vm418, %v415
      %433 = vst.msk [vmem:[%s4 + $0x70] sm:$0xff] %vm418, %v416
      %434 = vst.msk [vmem:[%s4 + $0x78] sm:$0xff] %vm418, %v417
    $region33: #{tpu_custom_call.1} parent=1 // pred_fallthru
      _
    // Predicated region
    $region34: #{tpu_custom_call.1} parent=1 // pred_check
      _
    $region35: #{tpu_custom_call.1} parent=1 // pred_check_branch
      %436 = sbr.rel (0) target = $region37
    $region36: #{tpu_custom_call.1} parent=1 // pred_region
      _
    $region37: #{tpu_custom_call.1} parent=1 // pred_fallthru
      _
    // Predicated region
    $region38: #{tpu_custom_call.1} parent=1 // pred_check
      _
    $region39: #{tpu_custom_call.1} parent=1 // pred_check_branch
      %438 = sbr.rel (0) target = $region41
    $region40: #{tpu_custom_call.1} parent=1 // pred_region
      _
    $region41: #{tpu_custom_call.1} parent=1 // pred_fallthru
      _
    %439 = vsyncpa [#allocation5], 1
    %440 = vsyncpa [#allocation7], 1

</llo_original>
